<compile_context>
chip_gen: v7x
topology: tpu7x:2x2x1
jax: 0.10.0
libtpu: 0.0.40
codegen_flags: <defaults>
</compile_context>

<pallas_src>
import functools

import jax
import jax.numpy as jnp
from jax import lax
from jax.experimental import pallas as pl
from jax.experimental.pallas import tpu as pltpu

KERNEL_MUL = 2.0
KERNEL_NUM = 5

_VMEM_TILE_BUDGET = 36 * 1024 * 1024   # keep streamed tiles well under v7x's 64 MiB
_VMEM_LIMIT_BYTES = 48 * 1024 * 1024


def _round_up(x, m):
    return ((x + m - 1) // m) * m


def _vmem_tile_bytes(tile, featp, in_bytes):
    # row + col (tile, featp) streamed blocks (double-buffered) plus the f32
    # (tile, tile) intermediates (gram / l2 / ksum / weighted).
    stream = 2 * 2 * tile * featp * in_bytes
    inter = 4 * tile * tile * 4
    return stream + inter


def _choose_tile(n, featp, in_bytes):
    """Pick the row/col tile size.

    n <= 128: a single tile rounded to the sublane granule.  Otherwise the tile
    must be a multiple of 128 (lane dim of the sq/sign row vectors and of the
    per-tile output block); pick from {128, 256, 384, 512} minimizing padded
    work, preferring >= 2 row tiles (v7x megacore) then the largest tile
    (fewer grid steps, better MXU shape on v5e/v6e), under the VMEM budget.
    """
    if n <= 128:
        return _round_up(n, 16 if in_bytes == 2 else 8)
    cands = [t for t in (128, 256, 384, 512)
             if _vmem_tile_bytes(t, featp, in_bytes) <= _VMEM_TILE_BUDGET]
    if not cands:
        # TODO(synk): K-axis tiling for very large feature dims (see header).
        cands = [128]
    best_key, best_tile = None, None
    for t in cands:
        n_pad = _round_up(n, t)
        gi = n_pad // t
        key = (n_pad, 0 if gi >= 2 else 1, -t)
        if best_key is None or key < best_key:
            best_key, best_tile = key, t
    return best_tile


def _mmd_tri_tile_kernel(ri_ref,        # SMEM (T,)  i32: block-row index per tile
                         ci_ref,        # SMEM (T,)  i32: block-col index per tile
                         nb_ref,        # SMEM (kernel_num,) f32: -1/bw_k
                         xr_ref,        # VMEM (tile, featp)  row tile of `total`
                         xc_ref,        # VMEM (tile, featp)  col tile of `total`
                         sqi_ref,       # VMEM (tile, 1)      row sums of squares
                         sqj_ref,       # VMEM (1, tile)      col sums of squares
                         sgi_ref,       # VMEM (tile, 1)      row signs (+1/-1/0)
                         sgj_ref,       # VMEM (1, tile)      col signs (+1/-1/0)
                         out_ref,       # VMEM (1, tile)      per-tile lane partials
                         *, kernel_num, bf16_exp):
    t = pl.program_id(0)

    # Gram tile on the MXU, f32 accumulation (inputs may be f32 or bf16).
    gram = lax.dot_general(
        xr_ref[...], xc_ref[...],
        dimension_numbers=(((1,), (1,)), ((), ())),
        preferred_element_type=jnp.float32,
    )                                                        # (tile, tile)

    # L2[i,j] = ||x_i||^2 + ||x_j||^2 - 2 <x_i, x_j>; clamp tiny negative
    # cancellation noise so exp() stays faithful to the (a-b)^2 reference.
    l2 = jnp.maximum(sqi_ref[...] + sqj_ref[...] - 2.0 * gram, 0.0)

    # 5-bandwidth Gaussian kernel sum; per-bandwidth scalars are pre-hoisted to
    # -1/bw_k in SMEM, so the hot loop is kernel_num exps (EUP) + VPU mul/add.
    ksum = jnp.zeros_like(l2)
    for k in range(kernel_num):
        scaled = l2 * nb_ref[k]
        if bf16_exp:
            # Optional v6e/v7x fast path: bf16 EUP has ~2x transcendental rate.
            ksum = ksum + jnp.exp(scaled.astype(jnp.bfloat16)).astype(jnp.float32)
        else:
            ksum = ksum + jnp.exp(scaled)

    # Sign-weighted reduction over the sublane (row) axis only; the lane sum
    # over all tiles is finished by a cheap jnp.sum in the wrapper, so no
    # cross-lane XLU reduce or masked (1,1) RMW sits in the hot loop.
    weighted = ksum * (sgi_ref[...] * sgj_ref[...])          # (tile, tile)
    col_part = jnp.sum(weighted, axis=0, keepdims=True)      # (1, tile)

    # Upper-triangular schedule: off-diagonal tiles stand in for their mirror.
    w_tile = jnp.where(ri_ref[t] == ci_ref[t],
                       jnp.float32(1.0), jnp.float32(2.0))
    out_ref[...] = w_tile * col_part


def mmd_loss(source, target, kernel_mul=KERNEL_MUL, kernel_num=KERNEL_NUM,
             use_bf16_gram=False, use_bf16_exp=False):
    """Pallas TPU implementation of MMD_loss.forward(source, target)."""
    if source.shape != target.shape:
        # Mirrors the PyTorch module's early-exit behavior.
        return jnp.asarray(-1.0, dtype=jnp.float32)

    b = source.shape[0]
    total = jnp.concatenate([source, target], axis=0).astype(jnp.float32)
    n, feat = total.shape

    # ---- cheap O(n*feat) glue in plain JAX: closed-form bandwidth ----
    #   sum(L2) = 2 * (n * sum_i ||x_i||^2 - ||sum_i x_i||^2)
    sq = jnp.sum(total * total, axis=1)                        # (n,)
    colsum = jnp.sum(total, axis=0)                            # (feat,)
    sum_l2 = 2.0 * (jnp.float32(n) * jnp.sum(sq) - jnp.sum(colsum * colsum))
    bandwidth = sum_l2 / jnp.float32(n * n - n)                # fix_sigma=None branch
    bandwidth = bandwidth / jnp.float32(kernel_mul ** (kernel_num // 2))
    neg_inv_bw = jnp.stack(
        [-1.0 / (bandwidth * jnp.float32(kernel_mul ** i)) for i in range(kernel_num)]
    ).astype(jnp.float32)                                      # (kernel_num,)

    # ---- tiling & padding (padded rows carry sign 0 -> contribute nothing) ----
    in_dtype = jnp.bfloat16 if use_bf16_gram else jnp.float32
    in_bytes = 2 if use_bf16_gram else 4
    featp = _round_up(feat, 128)              # lane-align the contraction dim
    tile = _choose_tile(n, featp, in_bytes)
    n_pad = _round_up(n, tile)
    gi = n_pad // tile

    total_p = jnp.pad(total, ((0, n_pad - n), (0, featp - feat))).astype(in_dtype)
    sq_p = jnp.pad(sq, (0, n_pad - n))
    idx = jnp.arange(n_pad)
    sgn = jnp.where(idx < b, 1.0, jnp.where(idx < n, -1.0, 0.0)).astype(jnp.float32)

    sq_col, sq_row = sq_p.reshape(n_pad, 1), sq_p.reshape(1, n_pad)
    sg_col, sg_row = sgn.reshape(n_pad, 1), sgn.reshape(1, n_pad)

    # Upper-triangular tile schedule (~2x fewer tiles via symmetry); the block
    # indices are scalar-prefetched so skipped tiles cost no DMA at all.
    pairs = [(i, j) for i in range(gi) for j in range(i, gi)]
    num_tiles = len(pairs)
    row_blk = jnp.asarray([p[0] for p in pairs], dtype=jnp.int32)
    col_blk = jnp.asarray([p[1] for p in pairs], dtype=jnp.int32)

    kernel = functools.partial(_mmd_tri_tile_kernel, kernel_num=kernel_num,
                               bf16_exp=use_bf16_exp)

    out = pl.pallas_call(
        kernel,
        out_shape=jax.ShapeDtypeStruct((1, num_tiles * tile), jnp.float32),
        grid_spec=pltpu.PrefetchScalarGridSpec(
            num_scalar_prefetch=3,                  # row_blk, col_blk, neg_inv_bw
            grid=(num_tiles,),
            in_specs=[
                pl.BlockSpec((tile, featp), lambda t, ri, ci, nb: (ri[t], 0)),  # row tile
                pl.BlockSpec((tile, featp), lambda t, ri, ci, nb: (ci[t], 0)),  # col tile
                pl.BlockSpec((tile, 1), lambda t, ri, ci, nb: (ri[t], 0)),      # sq rows
                pl.BlockSpec((1, tile), lambda t, ri, ci, nb: (0, ci[t])),      # sq cols
                pl.BlockSpec((tile, 1), lambda t, ri, ci, nb: (ri[t], 0)),      # sign rows
                pl.BlockSpec((1, tile), lambda t, ri, ci, nb: (0, ci[t])),      # sign cols
            ],
            out_specs=pl.BlockSpec((1, tile), lambda t, ri, ci, nb: (0, t)),
        ),
        compiler_params=pltpu.CompilerParams(
            dimension_semantics=("parallel",),      # every triangular tile is independent
            vmem_limit_bytes=_VMEM_LIMIT_BYTES),
    )(row_blk, col_blk, neg_inv_bw, total_p, total_p,
      sq_col, sq_row, sg_col, sg_row)

    # Tiny finishing reduction in plain JAX (num_tiles * tile f32 values).
    return jnp.sum(out) / jnp.float32(b * b)


def _mmd_loss_ref(source, target, kernel_mul=KERNEL_MUL, kernel_num=KERNEL_NUM):
    """Pure-JAX reference mirroring the PyTorch code exactly (sanity check)."""
    if source.shape != target.shape:
        return jnp.asarray(-1.0, dtype=jnp.float32)
    batch_size = source.shape[0]
    total = jnp.concatenate([source, target], axis=0).astype(jnp.float32)
    n = total.shape[0]
    total0 = total[None, :, :]
    total1 = total[:, None, :]
    l2 = jnp.sum((total0 - total1) ** 2, axis=2)
    bandwidth = jnp.sum(l2) / (n * n - n)
    bandwidth = bandwidth / (kernel_mul ** (kernel_num // 2))
    kernels = sum(jnp.exp(-l2 / (bandwidth * kernel_mul ** i)) for i in range(kernel_num))
    bsz = batch_size
    return jnp.mean(kernels[:bsz, :bsz] + kernels[bsz:, bsz:]
                    - kernels[:bsz, bsz:] - kernels[bsz:, :bsz])


if __name__ == "__main__":
    key = jax.random.PRNGKey(0)
    k_src, k_tgt = jax.random.split(key)
    batch, feat = 8, 32
    source = jax.random.normal(k_src, (batch, feat), dtype=jnp.float32)
    target = jax.random.normal(k_tgt, (batch, feat), dtype=jnp.float32) + 0.5

    loss = jax.block_until_ready(mmd_loss(source, target))
    ref = jax.block_until_ready(_mmd_loss_ref(source, target))
    assert jnp.allclose(loss, ref, rtol=1e-4, atol=1e-5), (loss, ref)

    # Padding / zero-sign masking path (batch not a multiple of 8).
    loss2 = jax.block_until_ready(mmd_loss(source[:6], target[:6]))
    ref2 = jax.block_until_ready(_mmd_loss_ref(source[:6], target[:6]))
    assert jnp.allclose(loss2, ref2, rtol=1e-4, atol=1e-5), (loss2, ref2)

    # Multi-tile upper-triangular path (n=192 -> tile=128, 2x2 blocks -> 3 tiles,
    # off-diagonal weight 2) plus feature padding (48 -> 128).
    k3, k4 = jax.random.split(jax.random.PRNGKey(1))
    src3 = jax.random.normal(k3, (96, 48), dtype=jnp.float32)
    tgt3 = jax.random.normal(k4, (96, 48), dtype=jnp.float32) * 1.2 + 0.3
    loss3 = jax.block_until_ready(mmd_loss(src3, tgt3))
    ref3 = jax.block_until_ready(_mmd_loss_ref(src3, tgt3))
    assert jnp.allclose(loss3, ref3, rtol=1e-3, atol=1e-4), (loss3, ref3)

    # Optional bf16-gram fast path: exercise compile/run and basic sanity only
    # (accuracy vs. the f32 reference is validated separately before enabling).
    loss_bf16 = jax.block_until_ready(mmd_loss(source, target, use_bf16_gram=True))
    assert bool(jnp.isfinite(loss_bf16)), loss_bf16

    print("KERNEL_OK")
</pallas_src>

<mosaic_0001>
module attributes {stable_mosaic.version = 11 : i64} {
  func.func @_mmd_tri_tile_kernel(%arg0: i32, %arg1: memref<1xi32, #tpu.memory_space<smem>>, %arg2: memref<1xi32, #tpu.memory_space<smem>>, %arg3: memref<5xf32, #tpu.memory_space<smem>>, %arg4: memref<16x128xf32, #tpu.memory_space<vmem>>, %arg5: memref<16x128xf32, #tpu.memory_space<vmem>>, %arg6: memref<16x1xf32, #tpu.memory_space<vmem>>, %arg7: memref<1x16xf32, #tpu.memory_space<vmem>>, %arg8: memref<16x1xf32, #tpu.memory_space<vmem>>, %arg9: memref<1x16xf32, #tpu.memory_space<vmem>>, %arg10: memref<1x16xf32, #tpu.memory_space<vmem>>) attributes {dimension_semantics = [#tpu.dimension_semantics<parallel>], iteration_bounds = array<i64: 1>, scalar_prefetch = 3 : i64, scratch_operands = 0 : i64, tpu.core_type = #tpu.core_type<tc>, window_params = [{transform_indices = @transform_0, window_bounds = array<i64: 16, 128>}, {transform_indices = @transform_1, window_bounds = array<i64: 16, 128>}, {transform_indices = @transform_2, window_bounds = array<i64: 16, 1>}, {transform_indices = @transform_3, window_bounds = array<i64: 1, 16>}, {transform_indices = @transform_4, window_bounds = array<i64: 16, 1>}, {transform_indices = @transform_5, window_bounds = array<i64: 1, 16>}, {transform_indices = @transform_6, window_bounds = array<i64: 1, 16>}]} {
    %c0 = arith.constant 0 : index
    %c0_0 = arith.constant 0 : index
    %0 = vector.load %arg4[%c0, %c0_0] : memref<16x128xf32, #tpu.memory_space<vmem>>, vector<16x128xf32>
    %c0_1 = arith.constant 0 : index
    %c0_2 = arith.constant 0 : index
    %1 = vector.load %arg5[%c0_1, %c0_2] : memref<16x128xf32, #tpu.memory_space<vmem>>, vector<16x128xf32>
    %cst = arith.constant dense<0.000000e+00> : vector<16x16xf32>
    %2 = tpu.matmul %0, %1, %cst {dimension_numbers = #tpu.dot_dimension_numbers<[1], [1], [0], [0], [0, 0, 1, 0], [], []>} : vector<16x128xf32>, vector<16x128xf32>, vector<16x16xf32> -> vector<16x16xf32>
    %c0_3 = arith.constant 0 : index
    %c0_4 = arith.constant 0 : index
    %3 = vector.load %arg6[%c0_3, %c0_4] : memref<16x1xf32, #tpu.memory_space<vmem>>, vector<16x1xf32>
    %c0_5 = arith.constant 0 : index
    %c0_6 = arith.constant 0 : index
    %4 = vector.load %arg7[%c0_5, %c0_6] : memref<1x16xf32, #tpu.memory_space<vmem>>, vector<1x16xf32>
    %5 = vector.broadcast %3 : vector<16x1xf32> to vector<16x16xf32>
    %6 = vector.broadcast %4 : vector<1x16xf32> to vector<16x16xf32>
    %7 = arith.addf %5, %6 : vector<16x16xf32>
    %cst_7 = arith.constant 2.000000e+00 : f32
    %8 = vector.broadcast %cst_7 : f32 to vector<16x16xf32>
    %9 = arith.mulf %8, %2 : vector<16x16xf32>
    %10 = arith.subf %7, %9 : vector<16x16xf32>
    %cst_8 = arith.constant 0.000000e+00 : f32
    %11 = vector.broadcast %cst_8 : f32 to vector<16x16xf32>
    %12 = arith.maximumf %10, %11 : vector<16x16xf32>
    %cst_9 = arith.constant 0.000000e+00 : f32
    %13 = vector.broadcast %cst_9 : f32 to vector<16x16xf32>
    %c0_10 = arith.constant 0 : index
    %14 = memref.load %arg3[%c0_10] : memref<5xf32, #tpu.memory_space<smem>>
    %15 = vector.broadcast %14 : f32 to vector<16x16xf32>
    %16 = arith.mulf %12, %15 : vector<16x16xf32>
    %17 = math.exp %16 : vector<16x16xf32>
    %18 = arith.addf %13, %17 : vector<16x16xf32>
    %c1 = arith.constant 1 : index
    %19 = memref.load %arg3[%c1] : memref<5xf32, #tpu.memory_space<smem>>
    %20 = vector.broadcast %19 : f32 to vector<16x16xf32>
    %21 = arith.mulf %12, %20 : vector<16x16xf32>
    %22 = math.exp %21 : vector<16x16xf32>
    %23 = arith.addf %18, %22 : vector<16x16xf32>
    %c2 = arith.constant 2 : index
    %24 = memref.load %arg3[%c2] : memref<5xf32, #tpu.memory_space<smem>>
    %25 = vector.broadcast %24 : f32 to vector<16x16xf32>
    %26 = arith.mulf %12, %25 : vector<16x16xf32>
    %27 = math.exp %26 : vector<16x16xf32>
    %28 = arith.addf %23, %27 : vector<16x16xf32>
    %c3 = arith.constant 3 : index
    %29 = memref.load %arg3[%c3] : memref<5xf32, #tpu.memory_space<smem>>
    %30 = vector.broadcast %29 : f32 to vector<16x16xf32>
    %31 = arith.mulf %12, %30 : vector<16x16xf32>
    %32 = math.exp %31 : vector<16x16xf32>
    %33 = arith.addf %28, %32 : vector<16x16xf32>
    %c4 = arith.constant 4 : index
    %34 = memref.load %arg3[%c4] : memref<5xf32, #tpu.memory_space<smem>>
    %35 = vector.broadcast %34 : f32 to vector<16x16xf32>
    %36 = arith.mulf %12, %35 : vector<16x16xf32>
    %37 = math.exp %36 : vector<16x16xf32>
    %38 = arith.addf %33, %37 : vector<16x16xf32>
    %c0_11 = arith.constant 0 : index
    %c0_12 = arith.constant 0 : index
    %39 = vector.load %arg8[%c0_11, %c0_12] : memref<16x1xf32, #tpu.memory_space<vmem>>, vector<16x1xf32>
    %c0_13 = arith.constant 0 : index
    %c0_14 = arith.constant 0 : index
    %40 = vector.load %arg9[%c0_13, %c0_14] : memref<1x16xf32, #tpu.memory_space<vmem>>, vector<1x16xf32>
    %41 = vector.broadcast %39 : vector<16x1xf32> to vector<16x16xf32>
    %42 = vector.broadcast %40 : vector<1x16xf32> to vector<16x16xf32>
    %43 = arith.mulf %41, %42 : vector<16x16xf32>
    %44 = arith.mulf %38, %43 : vector<16x16xf32>
    %cst_15 = arith.constant dense<0.000000e+00> : vector<16xf32>
    %45 = vector.multi_reduction <add>, %44, %cst_15 [0] : vector<16x16xf32> to vector<16xf32>
    %46 = vector.shape_cast %45 : vector<16xf32> to vector<1x16xf32>
    %47 = arith.index_cast %arg0 : i32 to index
    %48 = memref.load %arg1[%47] : memref<1xi32, #tpu.memory_space<smem>>
    %49 = arith.index_cast %arg0 : i32 to index
    %50 = memref.load %arg2[%49] : memref<1xi32, #tpu.memory_space<smem>>
    %51 = arith.cmpi eq, %48, %50 : i32
    %cst_16 = arith.constant 1.000000e+00 : f32
    %cst_17 = arith.constant 2.000000e+00 : f32
    %52 = arith.select %51, %cst_16, %cst_17 : f32
    %53 = vector.broadcast %52 : f32 to vector<1x16xf32>
    %54 = arith.mulf %53, %46 : vector<1x16xf32>
    %c0_18 = arith.constant 0 : index
    %c0_19 = arith.constant 0 : index
    %55 = vector.load %arg10[%c0_18, %c0_19] : memref<1x16xf32, #tpu.memory_space<vmem>>, vector<1x16xf32>
    tpu.vector_store %arg10[%c0_18, %c0_19], %54 {strides = array<i32>} : memref<1x16xf32, #tpu.memory_space<vmem>>, vector<1x16xf32>,
    return
  }
  func.func @transform_0(%arg0: i32, %arg1: memref<1xi32, #tpu.memory_space<smem>>, %arg2: memref<1xi32, #tpu.memory_space<smem>>, %arg3: memref<5xf32, #tpu.memory_space<smem>>) -> (i32, i32) {
    %0 = arith.index_cast %arg0 : i32 to index
    %1 = memref.load %arg1[%0] : memref<1xi32, #tpu.memory_space<smem>>
    %c0_i32 = arith.constant 0 : i32
    %c0_i32_0 = arith.constant 0 : i32
    return %1, %c0_i32 : i32, i32
  }
  func.func @transform_1(%arg0: i32, %arg1: memref<1xi32, #tpu.memory_space<smem>>, %arg2: memref<1xi32, #tpu.memory_space<smem>>, %arg3: memref<5xf32, #tpu.memory_space<smem>>) -> (i32, i32) {
    %0 = arith.index_cast %arg0 : i32 to index
    %1 = memref.load %arg2[%0] : memref<1xi32, #tpu.memory_space<smem>>
    %c0_i32 = arith.constant 0 : i32
    %c0_i32_0 = arith.constant 0 : i32
    return %1, %c0_i32 : i32, i32
  }
  func.func @transform_2(%arg0: i32, %arg1: memref<1xi32, #tpu.memory_space<smem>>, %arg2: memref<1xi32, #tpu.memory_space<smem>>, %arg3: memref<5xf32, #tpu.memory_space<smem>>) -> (i32, i32) {
    %0 = arith.index_cast %arg0 : i32 to index
    %1 = memref.load %arg1[%0] : memref<1xi32, #tpu.memory_space<smem>>
    %c0_i32 = arith.constant 0 : i32
    %c0_i32_0 = arith.constant 0 : i32
    return %1, %c0_i32 : i32, i32
  }
  func.func @transform_3(%arg0: i32, %arg1: memref<1xi32, #tpu.memory_space<smem>>, %arg2: memref<1xi32, #tpu.memory_space<smem>>, %arg3: memref<5xf32, #tpu.memory_space<smem>>) -> (i32, i32) {
    %0 = arith.index_cast %arg0 : i32 to index
    %1 = memref.load %arg2[%0] : memref<1xi32, #tpu.memory_space<smem>>
    %c0_i32 = arith.constant 0 : i32
    %c0_i32_0 = arith.constant 0 : i32
    return %c0_i32, %1 : i32, i32
  }
  func.func @transform_4(%arg0: i32, %arg1: memref<1xi32, #tpu.memory_space<smem>>, %arg2: memref<1xi32, #tpu.memory_space<smem>>, %arg3: memref<5xf32, #tpu.memory_space<smem>>) -> (i32, i32) {
    %0 = arith.index_cast %arg0 : i32 to index
    %1 = memref.load %arg1[%0] : memref<1xi32, #tpu.memory_space<smem>>
    %c0_i32 = arith.constant 0 : i32
    %c0_i32_0 = arith.constant 0 : i32
    return %1, %c0_i32 : i32, i32
  }
  func.func @transform_5(%arg0: i32, %arg1: memref<1xi32, #tpu.memory_space<smem>>, %arg2: memref<1xi32, #tpu.memory_space<smem>>, %arg3: memref<5xf32, #tpu.memory_space<smem>>) -> (i32, i32) {
    %0 = arith.index_cast %arg0 : i32 to index
    %1 = memref.load %arg2[%0] : memref<1xi32, #tpu.memory_space<smem>>
    %c0_i32 = arith.constant 0 : i32
    %c0_i32_0 = arith.constant 0 : i32
    return %c0_i32, %1 : i32, i32
  }
  func.func @transform_6(%arg0: i32, %arg1: memref<1xi32, #tpu.memory_space<smem>>, %arg2: memref<1xi32, #tpu.memory_space<smem>>, %arg3: memref<5xf32, #tpu.memory_space<smem>>) -> (i32, i32) {
    %c0_i32 = arith.constant 0 : i32
    %c0_i32_0 = arith.constant 0 : i32
    return %c0_i32, %arg0 : i32, i32
  }
}

</mosaic_0001>

<llo_original>
// kernel: tpu_custom_call.1
$region0: #{tpu_custom_call.1}
  #allocation0 [shape = 'u32[]', space=smem, size = 0x4, offset = 0x4, fixed_abs, tag = 'smem constant byte address 0x4 - core index']
  #allocation1 [shape = 'u32[144,128]{1,0:T(1,128)}', space=vmem, size = 0x12000, scoped, tag = 'internal scratch']
  #allocation2 [shape = 's32[1]{0}', space=sflag, size = 0x4, scoped, tag = 'scoped memory for tpu_custom_call.1']
  #allocation3 [shape = 's32[1]{0:T(128)S(6)}', space=smem, size = 0x200, scoped, tag = 'prefetched SMEM operand 0']
  #allocation4 [shape = 's32[1]{0:T(128)S(6)}', space=smem, size = 0x200, scoped, tag = 'prefetched SMEM operand 1']
  #allocation5 [shape = 'u8[512]{0}', space=smem, size = 0x200, scoped, tag = 'prefetched SMEM operand 2']
  %s0 = inlined_call_operand.<no memory space> [shape: s32[1], index: 0, kind: input, shape index: {}]
  %s1 = inlined_call_operand.<no memory space> [shape: s32[1], index: 1, kind: input, shape index: {}]
  %s2 = inlined_call_operand.vmem [shape: f32[5], index: 2, kind: input, shape index: {}]
  %s3 = inlined_call_operand.vmem [shape: f32[16,128], index: 3, kind: input, shape index: {}]
  %s4 = inlined_call_operand.vmem [shape: f32[16,128], index: 4, kind: input, shape index: {}]
  %s5 = inlined_call_operand.vmem [shape: f32[16,1], index: 5, kind: input, shape index: {}]
  %s6 = inlined_call_operand.vmem [shape: f32[1,16], index: 6, kind: input, shape index: {}]
  %s7 = inlined_call_operand.vmem [shape: f32[16,1], index: 7, kind: input, shape index: {}]
  %s8 = inlined_call_operand.vmem [shape: f32[1,16], index: 8, kind: input, shape index: {}]
  %s9 = inlined_call_operand.hbm [shape: f32[1,16], index: 9, kind: output, shape index: {}]
  %s10 = sld [smem:[#allocation0]]
  $region34: #{tpu_custom_call.1} parent=0
    _
  %s12 = ssub.s32 1, %s10
  %s13 = scalar_select 0, %s12, %s10
  %14 = sst [smem:[#allocation3]] %s0
  %15 = sst [smem:[#allocation4]] %s1
  %s16 = sshll.u32 %s2, 4
  %s17 = int_to_ptr.vmem [resolvable:$true] %s16
  %19 = dma.vmem_to_smem %s17, 16, [#allocation5], [#allocation2]
  %20 = dma.done [#allocation2], 16
  %21 = sfence
  $region1: #{tpu_custom_call.1} parent=0
    #allocation6 [shape = 'u8[512]{0}', space=vmem, size = 0x400, scoped, tag = 'output window, operand 0, single buffered']
    #allocation7 [shape = 's32[1]{0}', space=sflag, size = 0x4, scoped, tag = 'scoped memory for tpu_custom_call.1']
    %22 = vsyncpa [#allocation7], 0
    // Predicated region
    $region2: #{tpu_custom_call.1} parent=1 // pred_check
      _
    $region3: #{tpu_custom_call.1} parent=1 // pred_check_branch
      %24 = sbr.rel (0) target = $region5
    $region4: #{tpu_custom_call.1} parent=1 // pred_region
      %s25 = sld [smem:[#allocation3]]
      %s26 = smul.u32 2, %s25
      %p27 = scmp.lt.s32.totalorder %s26, 1
      %s28 = scalar_select %p27, %s26, 1
      %s29 = smul.addr %s28, 8
      %s30 = scalar_lea.vmem %s3, %s29
      %s31 = sld [smem:[#allocation3]]
      %s32 = smul.u32 2, %s31
    $region5: #{tpu_custom_call.1} parent=1 // pred_fallthru
      _
    // Predicated region
    $region6: #{tpu_custom_call.1} parent=1 // pred_check
      _
    $region7: #{tpu_custom_call.1} parent=1 // pred_check_branch
      %34 = sbr.rel (0) target = $region9
    $region8: #{tpu_custom_call.1} parent=1 // pred_region
      %s35 = sld [smem:[#allocation4]]
      %s36 = smul.u32 2, %s35
      %p37 = scmp.lt.s32.totalorder %s36, 1
      %s38 = scalar_select %p37, %s36, 1
      %s39 = smul.addr %s38, 8
      %s40 = scalar_lea.vmem %s4, %s39
      %s41 = sld [smem:[#allocation4]]
      %s42 = smul.u32 2, %s41
    $region9: #{tpu_custom_call.1} parent=1 // pred_fallthru
      _
    // Predicated region
    $region10: #{tpu_custom_call.1} parent=1 // pred_check
      _
    $region11: #{tpu_custom_call.1} parent=1 // pred_check_branch
      %44 = sbr.rel (0) target = $region13
    $region12: #{tpu_custom_call.1} parent=1 // pred_region
      %s45 = sld [smem:[#allocation3]]
      %s46 = smul.u32 2, %s45
      %p47 = scmp.lt.s32.totalorder %s46, 1
      %s48 = scalar_select %p47, %s46, 1
      %s49 = smul.addr %s48, 8
      %s50 = scalar_lea.vmem %s5, %s49
      %s51 = sld [smem:[#allocation3]]
      %s52 = smul.u32 2, %s51
    $region13: #{tpu_custom_call.1} parent=1 // pred_fallthru
      _
    // Predicated region
    $region14: #{tpu_custom_call.1} parent=1 // pred_check
      _
    $region15: #{tpu_custom_call.1} parent=1 // pred_check_branch
      %54 = sbr.rel (0) target = $region17
    $region16: #{tpu_custom_call.1} parent=1 // pred_region
      %s55 = sld [smem:[#allocation4]]
      %p56 = scmp.lt.s32.totalorder %s55, 0
      %s57 = scalar_select %p56, %s55, 0
      %s58 = scalar_lea.vmem %s6, %s57
      %s59 = sld [smem:[#allocation4]]
    $region17: #{tpu_custom_call.1} parent=1 // pred_fallthru
      _
    // Predicated region
    $region18: #{tpu_custom_call.1} parent=1 // pred_check
      _
    $region19: #{tpu_custom_call.1} parent=1 // pred_check_branch
      %61 = sbr.rel (0) target = $region21
    $region20: #{tpu_custom_call.1} parent=1 // pred_region
      %s62 = sld [smem:[#allocation3]]
      %s63 = smul.u32 2, %s62
      %p64 = scmp.lt.s32.totalorder %s63, 1
      %s65 = scalar_select %p64, %s63, 1
      %s66 = smul.addr %s65, 8
      %s67 = scalar_lea.vmem %s7, %s66
      %s68 = sld [smem:[#allocation3]]
      %s69 = smul.u32 2, %s68
    $region21: #{tpu_custom_call.1} parent=1 // pred_fallthru
      _
    // Predicated region
    $region22: #{tpu_custom_call.1} parent=1 // pred_check
      _
    $region23: #{tpu_custom_call.1} parent=1 // pred_check_branch
      %71 = sbr.rel (0) target = $region25
    $region24: #{tpu_custom_call.1} parent=1 // pred_region
      %s72 = sld [smem:[#allocation4]]
      %p73 = scmp.lt.s32.totalorder %s72, 0
      %s74 = scalar_select %p73, %s72, 0
      %s75 = scalar_lea.vmem %s8, %s74
      %s76 = sld [smem:[#allocation4]]
    $region25: #{tpu_custom_call.1} parent=1 // pred_fallthru
      _
    %s77 = sld [smem:[#allocation3]]
    %s78 = smul.u32 2, %s77
    %p79 = scmp.lt.s32.totalorder %s78, 1
    %s80 = scalar_select %p79, %s78, 1
    %s81 = smul.addr %s80, 8
    %s82 = scalar_lea.vmem %s3, %s81
    %s83 = sld [smem:[#allocation4]]
    %s84 = smul.u32 2, %s83
    %p85 = scmp.lt.s32.totalorder %s84, 1
    %s86 = scalar_select %p85, %s84, 1
    %s87 = smul.addr %s86, 8
    %s88 = scalar_lea.vmem %s4, %s87
    %s89 = sld [smem:[#allocation3]]
    %s90 = smul.u32 2, %s89
    %p91 = scmp.lt.s32.totalorder %s90, 1
    %s92 = scalar_select %p91, %s90, 1
    %s93 = smul.addr %s92, 8
    %s94 = scalar_lea.vmem %s5, %s93
    %s95 = sld [smem:[#allocation4]]
    %p96 = scmp.lt.s32.totalorder %s95, 0
    %s97 = scalar_select %p96, %s95, 0
    %s98 = scalar_lea.vmem %s6, %s97
    %s99 = sld [smem:[#allocation3]]
    %s100 = smul.u32 2, %s99
    %p101 = scmp.lt.s32.totalorder %s100, 1
    %s102 = scalar_select %p101, %s100, 1
    %s103 = smul.addr %s102, 8
    %s104 = scalar_lea.vmem %s7, %s103
    %s105 = sld [smem:[#allocation4]]
    %p106 = scmp.lt.s32.totalorder %s105, 0
    %s107 = scalar_select %p106, %s105, 0
    %s108 = scalar_lea.vmem %s8, %s107
    %s109 = sld [smem:[#allocation3]]
    %s110 = smul.u32 2, %s109
    %p111 = scmp.lt.s32.totalorder %s110, 1
    %s112 = scalar_select %p111, %s110, 1
    %s113 = smul.addr %s112, 8
    %s114 = scalar_lea.vmem %s3, %s113
    %s115 = sld [smem:[#allocation3]]
    %s116 = smul.u32 2, %s115
    %s117 = sld [smem:[#allocation4]]
    %s118 = smul.u32 2, %s117
    %p119 = scmp.lt.s32.totalorder %s118, 1
    %s120 = scalar_select %p119, %s118, 1
    %s121 = smul.addr %s120, 8
    %s122 = scalar_lea.vmem %s4, %s121
    %s123 = sld [smem:[#allocation4]]
    %s124 = smul.u32 2, %s123
    %s125 = sld [smem:[#allocation3]]
    %s126 = smul.u32 2, %s125
    %p127 = scmp.lt.s32.totalorder %s126, 1
    %s128 = scalar_select %p127, %s126, 1
    %s129 = smul.addr %s128, 8
    %s130 = scalar_lea.vmem %s5, %s129
    %s131 = sld [smem:[#allocation3]]
    %s132 = smul.u32 2, %s131
    %s133 = sld [smem:[#allocation4]]
    %p134 = scmp.lt.s32.totalorder %s133, 0
    %s135 = scalar_select %p134, %s133, 0
    %s136 = scalar_lea.vmem %s6, %s135
    %s137 = sld [smem:[#allocation4]]
    %s138 = sld [smem:[#allocation3]]
    %s139 = smul.u32 2, %s138
    %p140 = scmp.lt.s32.totalorder %s139, 1
    %s141 = scalar_select %p140, %s139, 1
    %s142 = smul.addr %s141, 8
    %s143 = scalar_lea.vmem %s7, %s142
    %s144 = sld [smem:[#allocation3]]
    %s145 = smul.u32 2, %s144
    %s146 = sld [smem:[#allocation4]]
    %p147 = scmp.lt.s32.totalorder %s146, 0
    %s148 = scalar_select %p147, %s146, 0
    %s149 = scalar_lea.vmem %s8, %s148
    %s150 = sld [smem:[#allocation4]]
    %v151 = vld [vmem:[%s114] sm:$0xff]
    %v152 = vld [vmem:[%s114 + $0x8] sm:$0xff]
    %v153 = vld [vmem:[%s122] sm:$0xff]
    %v154 = vld [vmem:[%s122 + $0x8] sm:$0xff]
    %155 = vmatprep.subr.mxu0 0.0
    %156 = vmatpush1.xpose.msra.mxu0 %v153
    %157 = vmatprep.subr.mxu0 0.0
    %158 = vmatpush1.xpose.msra.mxu0 %v154
    %159 = vmatprep.subr.mxu0 0.0
    %160 = vmatpush1.xpose.msra.mxu0 0.0
    %161 = vmatprep.subr.mxu0 0.0
    %162 = vmatpush1.xpose.msra.mxu0 0.0
    %163 = vmatprep.subr.mxu0 0.0
    %164 = vmatpush1.xpose.msra.mxu0 0.0
    %165 = vmatprep.subr.mxu0 0.0
    %166 = vmatpush1.xpose.msra.mxu0 0.0
    %167 = vmatprep.subr.mxu0 0.0
    %168 = vmatpush1.xpose.msra.mxu0 0.0
    %169 = vmatprep.subr.mxu0 0.0
    %170 = vmatpush1.xpose.msra.mxu0 0.0
    %171 = vmatprep.subr.mxu0 0.0
    %172 = vmatpush1.xpose.msra.mxu0 0.0
    %173 = vmatprep.subr.mxu0 0.0
    %174 = vmatpush1.xpose.msra.mxu0 0.0
    %175 = vmatprep.subr.mxu0 0.0
    %176 = vmatpush1.xpose.msra.mxu0 0.0
    %177 = vmatprep.subr.mxu0 0.0
    %178 = vmatpush1.xpose.msra.mxu0 0.0
    %179 = vmatprep.subr.mxu0 0.0
    %180 = vmatpush1.xpose.msra.mxu0 0.0
    %181 = vmatprep.subr.mxu0 0.0
    %182 = vmatpush1.xpose.msra.mxu0 0.0
    %183 = vmatprep.subr.mxu0 0.0
    %184 = vmatpush1.xpose.msra.mxu0 0.0
    %185 = vmatprep.subr.mxu0 0.0
    %186 = vmatpush1.xpose.msra.mxu0 0.0
    %187 = vmatprep.subr.mxu0 0.0
    %188 = vmatpush1.xpose.msra.mxu0 0.0
    %189 = vmatprep.subr.mxu0 0.0
    %190 = vmatpush1.xpose.msra.mxu0 0.0
    %191 = vmatprep.subr.mxu0 0.0
    %192 = vmatpush1.xpose.msra.mxu0 0.0
    %193 = vmatprep.subr.mxu0 0.0
    %194 = vmatpush1.xpose.msra.mxu0 0.0
    %195 = vmatprep.subr.mxu0 0.0
    %196 = vmatpush1.xpose.msra.mxu0 0.0
    %197 = vmatprep.subr.mxu0 0.0
    %198 = vmatpush1.xpose.msra.mxu0 0.0
    %199 = vmatprep.subr.mxu0 0.0
    %200 = vmatpush1.xpose.msra.mxu0 0.0
    %201 = vmatprep.subr.mxu0 0.0
    %202 = vmatpush1.xpose.msra.mxu0 0.0
    %203 = vmatprep.subr.mxu0 0.0
    %204 = vmatpush1.xpose.msra.mxu0 0.0
    %205 = vmatprep.subr.mxu0 0.0
    %206 = vmatpush1.xpose.msra.mxu0 0.0
    %207 = vmatprep.subr.mxu0 0.0
    %208 = vmatpush1.xpose.msra.mxu0 0.0
    %209 = vmatprep.subr.mxu0 0.0
    %210 = vmatpush1.xpose.msra.mxu0 0.0
    %211 = vmatprep.subr.mxu0 0.0
    %212 = vmatpush1.xpose.msra.mxu0 0.0
    %213 = vmatprep.subr.mxu0 0.0
    %214 = vmatpush1.xpose.msra.mxu0 0.0
    %215 = vmatprep.subr.mxu0 0.0
    %216 = vmatpush1.xpose.msra.mxu0 0.0
    %217 = vmatprep.subr.mxu0 0.0
    %218 = vmatpush1.xpose.msra.mxu0 0.0
    %219 = vmatprep.mubr.f32.mxu0 0.0
    %220 = vmatmul.mubr.f32.gmra.mrb[0].mxu0 %v151
    %v221 = vpop.f32.mrb[0].mxu0
    %v222 = vadd.f32 0.0, %v221
    %v223 = vpop.f32.mrb[0].mxu0
    %224 = vmatprep.mubr.f32.mxu0 0.0
    %225 = vmatmul.mubr.f32.gmra.mrb[0].mxu0 %v152
    %v226 = vpop.f32.mrb[0].mxu0
    %v227 = vadd.f32 0.0, %v226
    %v228 = vpop.f32.mrb[0].mxu0
    %229 = vdwg.mxu0
    %v230 = vld [vmem:[%s130] sm:$0xff]
    %v231 = vld [vmem:[%s130 + $0x8] sm:$0xff]
    %v232 = vld [vmem:[%s136] sm:$0x1]
    %234 = vset.pattern.permute.xlu0 0
    %235 = vperm.xlu0 %234, %v230
    %v236 = vpop.permute.xlu0 %235
    %239 = vset.pattern.permute.xlu0 0
    %240 = vperm.xlu0 %239, %v231
    %v241 = vpop.permute.xlu0 %240
    %v244 = vlaneseq
    %v245 = vshrl.u32 %v244, 7
    %v246 = vsub.s32 0, %v245
    %v247 = vrot.slane %v232, %v246
    %v249 = vadd.f32 %v236, %v247
    %v250 = vadd.f32 %v241, %v247
    %v251 = vmul.f32 %v222, 2.0
    %v252 = vmul.f32 %v227, 2.0
    %v253 = vsub.f32 %v249, %v251
    %v254 = vsub.f32 %v250, %v252
    %v255 = vmax.f32 %v253, 0.0
    %v256 = vmax.f32 %v254, 0.0
    %s257 = sld [smem:[#allocation5]]
    %v258 = vstv %s257
    %v259 = vmul.f32 %v255, %v258
    %v260 = vmul.f32 %v256, %v258
    %v261 = vmul.f32 %v259, 1.442695
    %v262 = vpow.pop %v261
    %v263 = vmul.f32 %v260, 1.442695
    %v264 = vpow.pop %v263
    %v265 = vadd.f32 %v262, 0.0
    %v266 = vadd.f32 %v264, 0.0
    %s267 = sld [smem:[#allocation5 + $0x1]]
    %v268 = vstv %s267
    %v269 = vmul.f32 %v255, %v268
    %v270 = vmul.f32 %v256, %v268
    %v271 = vmul.f32 %v269, 1.442695
    %v272 = vpow.pop %v271
    %v273 = vmul.f32 %v270, 1.442695
    %v274 = vpow.pop %v273
    %v275 = vadd.f32 %v265, %v272
    %v276 = vadd.f32 %v266, %v274
    %s277 = sld [smem:[#allocation5 + $0x2]]
    %v278 = vstv %s277
    %v279 = vmul.f32 %v255, %v278
    %v280 = vmul.f32 %v256, %v278
    %v281 = vmul.f32 %v279, 1.442695
    %v282 = vpow.pop %v281
    %v283 = vmul.f32 %v280, 1.442695
    %v284 = vpow.pop %v283
    %v285 = vadd.f32 %v275, %v282
    %v286 = vadd.f32 %v276, %v284
    %s287 = sld [smem:[#allocation5 + $0x3]]
    %v288 = vstv %s287
    %v289 = vmul.f32 %v255, %v288
    %v290 = vmul.f32 %v256, %v288
    %v291 = vmul.f32 %v289, 1.442695
    %v292 = vpow.pop %v291
    %v293 = vmul.f32 %v290, 1.442695
    %v294 = vpow.pop %v293
    %v295 = vadd.f32 %v285, %v292
    %v296 = vadd.f32 %v286, %v294
    %s297 = sld [smem:[#allocation5 + $0x4]]
    %v298 = vstv %s297
    %v299 = vmul.f32 %v255, %v298
    %v300 = vmul.f32 %v256, %v298
    %v301 = vmul.f32 %v299, 1.442695
    %v302 = vpow.pop %v301
    %v303 = vmul.f32 %v300, 1.442695
    %v304 = vpow.pop %v303
    %v305 = vadd.f32 %v295, %v302
    %v306 = vadd.f32 %v296, %v304
    %v307 = vld [vmem:[%s143] sm:$0xff]
    %v308 = vld [vmem:[%s143 + $0x8] sm:$0xff]
    %v309 = vld [vmem:[%s149] sm:$0x1]
    %311 = vset.pattern.permute.xlu0 0
    %312 = vperm.xlu0 %311, %v307
    %v313 = vpop.permute.xlu0 %312
    %316 = vset.pattern.permute.xlu0 0
    %317 = vperm.xlu0 %316, %v308
    %v318 = vpop.permute.xlu0 %317
    %v321 = vlaneseq
    %v322 = vshrl.u32 %v321, 7
    %v323 = vsub.s32 0, %v322
    %v324 = vrot.slane %v309, %v323
    %v326 = vmul.f32 %v313, %v324
    %v327 = vmul.f32 %v318, %v324
    %v328 = vmul.f32 %v305, %v326
    %v329 = vmul.f32 %v306, %v327
    %vm330 = vcmask 130048
    %v331 = vsel %vm330, %v328, 0.0
    %v332 = vsel %vm330, %v329, 0.0
    %v333 = vadd.f32 %v331, %v332
    %v334 = vrot.slane %v333, 4
    %v335 = vadd.f32 %v333, %v334
    %v336 = vrot.slane %v335, 2
    %v337 = vadd.f32 %v335, %v336
    %v338 = vrot.slane %v337, 1
    %v339 = vadd.f32 %v337, %v338
    %s340 = sld [smem:[#allocation3]]
    %s341 = sld [smem:[#allocation4]]
    %p342 = scmp.eq.s32.totalorder %s340, %s341
    %s343 = scalar_select %p342, 1.0, 2.0
    %v344 = vstv %s343
    %v345 = vmul.f32 %v344, %v339
    %vm346 = vcmask 122880
    %347 = vst.msk [vmem:[#allocation6] sm:$0x1] %vm346, %v345
    // Predicated region
    $region26: #{tpu_custom_call.1} parent=1 // pred_check
      _
    $region27: #{tpu_custom_call.1} parent=1 // pred_check_branch
      %349 = sbr.rel (0) target = $region29
    $region28: #{tpu_custom_call.1} parent=1 // pred_region
      %s351 = ssub.s32 16, 16
      %352 = vsyncadd [#allocation7], %s351
      %s354 = sshll.u32 [#allocation6], 4
      %s355 = int_to_ptr.vmem [resolvable:$true] %s354
      %357 = dma.vmem_to_hbm [thread:$0]  %s355, 16, %s9, [#allocation7]
    $region29: #{tpu_custom_call.1} parent=1 // pred_fallthru
      _
    // Predicated region
    $region30: #{tpu_custom_call.1} parent=1 // pred_check
      _
    $region31: #{tpu_custom_call.1} parent=1 // pred_check_branch
      %359 = sbr.rel (0) target = $region33
    $region32: #{tpu_custom_call.1} parent=1 // pred_region
      %360 = dma.done [#allocation7], 16
    $region33: #{tpu_custom_call.1} parent=1 // pred_fallthru
      _
    %361 = vsyncpa [#allocation7], 1

</llo_original>
